<compile_context>
chip_gen: v7x
topology: tpu7x:2x2x1
jax: 0.10.0
libtpu: 0.0.40
codegen_flags: <defaults>
</compile_context>

<pallas_src>
import jax
import jax.numpy as jnp
from jax.experimental import pallas as pl
from jax.experimental.pallas import tpu as pltpu


def _vmem_capacity_bytes():
    """Physical VMEM of the local TPU generation (fallback: v7x's 64 MiB)."""
    try:
        cap = getattr(pltpu.get_tpu_info(), "vmem_capacity_bytes", None)
        if cap:
            return int(cap)
    except Exception:
        pass
    return 64 << 20


def _largest_divisor_leq(n, cap):
    cap = max(1, min(int(cap), n))
    for d in range(cap, 0, -1):
        if n % d == 0:
            return d
    return 1


def _pick_tiles(B, N, M, Dpad, target_bytes):
    """Choose (bt, dt) blocks.

    dt is a lane-dense multiple of 128 dividing Dpad (prefer dt == Dpad so each
    batch's z slab is one long contiguous HBM run); bt is a divisor of B that
    fills the remaining per-step byte budget.  Sizing uses a 4-byte/element
    VMEM upper bound, which also covers half-packed sub-32-bit tiles (N,M < 16
    second-minor dims for bf16).
    """
    per_col = (N + M) * 4
    k_total = Dpad // 128
    if Dpad * per_col <= target_bytes or k_total == 1:
        dt = Dpad
    else:
        k = _largest_divisor_leq(k_total, target_bytes // (128 * per_col))
        dt = 128 * k
    bt = _largest_divisor_leq(B, target_bytes // (dt * per_col))
    # If everything landed in a single (large) grid step, split one axis so
    # both v7x TensorCores get work and the pipeline has >= 2 stages.  Small
    # problems stay single-step (splitting only adds overhead on 1-TC parts).
    if (B // bt) * (Dpad // dt) == 1 and bt * dt * per_col >= (4 << 20):
        if Dpad // 128 >= 2:
            dt = 128 * _largest_divisor_leq(Dpad // 128, (Dpad // 128) // 2)
        elif B >= 2:
            bt = _largest_divisor_leq(B, B // 2)
    return bt, dt


def _lgm_kernel(tc_ref, toc_ref, z_ref, out_ref):
    # tc_ref : [bt, N, 1] f32  (t_in - mean_t) / var_t   (per-batch slope weights)
    # toc_ref: [bt, M, 1] f32  (t_out - mean_t)          (per-batch query offsets)
    # z_ref  : [bt, N, dt] latent observations, native dtype (streamed)
    # out_ref: [bt, M, dt] predicted latents, native dtype
    #
    # Pure VPU/XLU path (no MXU): the per-batch [M~8, N~8] growth matmul would
    # use a tiny fraction of the MXU and need a per-batch weight load +
    # relayout; the closed-form OLS below is a handful of elementwise MACs and
    # two sublane reductions per tile, easily hidden under the HBM DMA.
    zf = z_ref[...].astype(jnp.float32)          # no-op for f32; f32 accum for bf16
    inv_n = 1.0 / z_ref.shape[1]
    mean_z = jnp.sum(zf, axis=1, keepdims=True) * inv_n        # [bt, 1, dt]
    slope = jnp.sum(tc_ref[...] * zf, axis=1, keepdims=True)   # [bt, 1, dt]
    pred = mean_z + toc_ref[...] * slope                       # [bt, M, dt]
    out_ref[...] = pred.astype(out_ref.dtype)


def lgm_forward(z_in, t_in, t_out):
    """z_in: [B, N, C, H, W], t_in: [B, N], t_out: [B, M] -> [B, M, C, H, W]."""
    B, N, C, H, W = z_in.shape
    M = t_out.shape[1]
    D = C * H * W
    out_dtype = z_in.dtype

    # Tiny per-batch OLS time statistics (f32, computed by XLA in the wrapper).
    t = t_in.astype(jnp.float32)
    to = t_out.astype(jnp.float32)
    mean_t = jnp.mean(t, axis=1, keepdims=True)            # [B, 1]
    tc = t - mean_t                                         # [B, N]
    var_t = jnp.sum(tc * tc, axis=1, keepdims=True)        # [B, 1]
    # NOTE: all-equal observed timepoints -> var_t == 0 -> inf/nan, matching
    # the reference OLS behavior (documented, not guarded).
    tc_scaled = (tc / var_t)[:, :, None]                    # [B, N, 1]
    toc = (to - mean_t)[:, :, None]                         # [B, M, 1]

    # Lane-dense latent stream: pad D to a multiple of 128 so stores are
    # unmasked vst and a single odd tile can never blow the VMEM limit.
    z_flat = z_in.reshape(B, N, D)
    Dpad = -(-D // 128) * 128
    if Dpad != D:
        z_flat = jnp.pad(z_flat, ((0, 0), (0, 0), (0, Dpad - D)))

    # Generation-aware per-step tile target (amortizes ~0.35us grid overhead).
    vmem_cap = _vmem_capacity_bytes()
    target_bytes = (16 << 20) if vmem_cap >= (96 << 20) else (12 << 20)
    bt, dt = _pick_tiles(B, N, M, Dpad, target_bytes)

    # VMEM footprint: double-buffered z/out blocks + resident time vectors.
    step_bytes = bt * dt * (N + M) * 4
    small_bytes = 2 * bt * (N + M) * 4
    vmem_needed = 2 * step_bytes + small_bytes + (8 << 20)   # + Mosaic scratch slack
    vmem_limit = int(min(max(vmem_needed, 16 << 20), vmem_cap - (8 << 20)))

    elem = jnp.dtype(out_dtype).itemsize
    cost = pl.CostEstimate(
        flops=int(2 * B * (N + M) * Dpad),
        transcendentals=0,
        bytes_accessed=int(B * (N + M) * Dpad * elem + B * (N + M) * 4),
    )

    # Grid order (b outer, d inner): the tiny time-vector blocks have
    # d-invariant index_maps, so Pallas keeps them resident across the whole
    # inner d sweep and never re-DMAs them. Do not swap the grid axes.
    out_flat = pl.pallas_call(
        _lgm_kernel,
        out_shape=jax.ShapeDtypeStruct((B, M, Dpad), out_dtype),
        grid_spec=pltpu.PrefetchScalarGridSpec(
            num_scalar_prefetch=0,
            grid=(B // bt, Dpad // dt),
            in_specs=[
                pl.BlockSpec((bt, N, 1), lambda b, d: (b, 0, 0)),
                pl.BlockSpec((bt, M, 1), lambda b, d: (b, 0, 0)),
                pl.BlockSpec((bt, N, dt), lambda b, d: (b, 0, d)),
            ],
            out_specs=pl.BlockSpec((bt, M, dt), lambda b, d: (b, 0, d)),
        ),
        compiler_params=pltpu.CompilerParams(
            dimension_semantics=("parallel", "parallel"),
            vmem_limit_bytes=vmem_limit,
        ),
        cost_estimate=cost,
    )(tc_scaled, toc, z_flat)

    if Dpad != D:
        out_flat = out_flat[:, :, :D]
    return out_flat.reshape(B, M, C, H, W)


def lgm_reference(z_in, t_in, t_out):
    B, N, C, H, W = z_in.shape
    M = t_out.shape[1]
    z = z_in.reshape(B, N, -1).astype(jnp.float32)
    t = t_in.astype(jnp.float32)
    to = t_out.astype(jnp.float32)
    mean_t = jnp.mean(t, axis=1, keepdims=True)                # [B,1]
    tc = t - mean_t                                            # [B,N]
    var_t = jnp.sum(tc * tc, axis=1, keepdims=True)            # [B,1]
    mean_z = jnp.mean(z, axis=1)                               # [B,D]
    slope = jnp.einsum("bn,bnd->bd", tc, z) / var_t            # [B,D]
    intercept = mean_z - slope * mean_t
    pred = intercept[:, None, :] + slope[:, None, :] * to[:, :, None]
    return pred.reshape(B, M, C, H, W).astype(z_in.dtype)


if __name__ == "__main__":
    key = jax.random.PRNGKey(0)
    B, N, M, C, H, W = 2, 8, 8, 4, 16, 16

    k1, k2, k3 = jax.random.split(key, 3)
    z_in = jax.random.normal(k1, (B, N, C, H, W), dtype=jnp.float32)
    # strictly increasing observed times plus query times beyond them
    t_in = jnp.sort(jax.random.uniform(k2, (B, N), dtype=jnp.float32), axis=1)
    t_out = jnp.sort(
        jax.random.uniform(k3, (B, M), dtype=jnp.float32) * 2.0, axis=1)

    out = jax.block_until_ready(lgm_forward(z_in, t_in, t_out))
    ref = lgm_reference(z_in, t_in, t_out)
    assert out.shape == (B, M, C, H, W)
    assert jnp.allclose(out, ref, atol=1e-4, rtol=1e-4)

    # Native-dtype streaming path (bf16 in / bf16 out, f32 accumulation).
    z_bf16 = z_in.astype(jnp.bfloat16)
    out_bf = jax.block_until_ready(lgm_forward(z_bf16, t_in, t_out))
    ref_bf = lgm_reference(z_bf16, t_in, t_out)
    assert out_bf.dtype == jnp.bfloat16
    assert jnp.allclose(out_bf.astype(jnp.float32), ref_bf.astype(jnp.float32),
                        atol=2e-2, rtol=2e-2)

    print("KERNEL_OK")
</pallas_src>

<mosaic_0001>
module attributes {stable_mosaic.version = 11 : i64} {
  func.func @_lgm_kernel(%arg0: i32, %arg1: i32, %arg2: memref<2x8x1xf32, #tpu.memory_space<vmem>>, %arg3: memref<2x8x1xf32, #tpu.memory_space<vmem>>, %arg4: memref<2x8x1024xf32, #tpu.memory_space<vmem>>, %arg5: memref<2x8x1024xf32, #tpu.memory_space<vmem>>) attributes {dimension_semantics = [#tpu.dimension_semantics<parallel>, #tpu.dimension_semantics<parallel>], iteration_bounds = array<i64: 1, 1>, scalar_prefetch = 0 : i64, scratch_operands = 0 : i64, tpu.core_type = #tpu.core_type<tc>, window_params = [{transform_indices = @transform_0, window_bounds = array<i64: 2, 8, 1>}, {transform_indices = @transform_1, window_bounds = array<i64: 2, 8, 1>}, {transform_indices = @transform_2, window_bounds = array<i64: 2, 8, 1024>}, {transform_indices = @transform_3, window_bounds = array<i64: 2, 8, 1024>}]} {
    %c0 = arith.constant 0 : index
    %c0_0 = arith.constant 0 : index
    %c0_1 = arith.constant 0 : index
    %0 = vector.load %arg4[%c0, %c0_0, %c0_1] : memref<2x8x1024xf32, #tpu.memory_space<vmem>>, vector<2x8x1024xf32>
    %cst = arith.constant dense<0.000000e+00> : vector<2x1024xf32>
    %1 = vector.multi_reduction <add>, %0, %cst [1] : vector<2x8x1024xf32> to vector<2x1024xf32>
    %2 = vector.shape_cast %1 : vector<2x1024xf32> to vector<2x1x1024xf32>
    %cst_2 = arith.constant 1.250000e-01 : f32
    %3 = vector.broadcast %cst_2 : f32 to vector<2x1x1024xf32>
    %4 = arith.mulf %2, %3 : vector<2x1x1024xf32>
    %c0_3 = arith.constant 0 : index
    %c0_4 = arith.constant 0 : index
    %c0_5 = arith.constant 0 : index
    %5 = vector.load %arg2[%c0_3, %c0_4, %c0_5] : memref<2x8x1xf32, #tpu.memory_space<vmem>>, vector<2x8x1xf32>
    %6 = vector.broadcast %5 : vector<2x8x1xf32> to vector<2x8x1024xf32>
    %7 = arith.mulf %6, %0 : vector<2x8x1024xf32>
    %cst_6 = arith.constant dense<0.000000e+00> : vector<2x1024xf32>
    %8 = vector.multi_reduction <add>, %7, %cst_6 [1] : vector<2x8x1024xf32> to vector<2x1024xf32>
    %9 = vector.shape_cast %8 : vector<2x1024xf32> to vector<2x1x1024xf32>
    %c0_7 = arith.constant 0 : index
    %c0_8 = arith.constant 0 : index
    %c0_9 = arith.constant 0 : index
    %10 = vector.load %arg3[%c0_7, %c0_8, %c0_9] : memref<2x8x1xf32, #tpu.memory_space<vmem>>, vector<2x8x1xf32>
    %11 = vector.broadcast %10 : vector<2x8x1xf32> to vector<2x8x1024xf32>
    %12 = vector.broadcast %9 : vector<2x1x1024xf32> to vector<2x8x1024xf32>
    %13 = arith.mulf %11, %12 : vector<2x8x1024xf32>
    %14 = vector.broadcast %4 : vector<2x1x1024xf32> to vector<2x8x1024xf32>
    %15 = arith.addf %14, %13 : vector<2x8x1024xf32>
    %c0_10 = arith.constant 0 : index
    %c0_11 = arith.constant 0 : index
    %c0_12 = arith.constant 0 : index
    %16 = vector.load %arg5[%c0_10, %c0_11, %c0_12] : memref<2x8x1024xf32, #tpu.memory_space<vmem>>, vector<2x8x1024xf32>
    tpu.vector_store %arg5[%c0_10, %c0_11, %c0_12], %15 {strides = array<i32>} : memref<2x8x1024xf32, #tpu.memory_space<vmem>>, vector<2x8x1024xf32>,
    return
  }
  func.func @transform_0(%arg0: i32, %arg1: i32) -> (i32, i32, i32) {
    %c0_i32 = arith.constant 0 : i32
    %c0_i32_0 = arith.constant 0 : i32
    %c0_i32_1 = arith.constant 0 : i32
    return %arg0, %c0_i32, %c0_i32_0 : i32, i32, i32
  }
  func.func @transform_1(%arg0: i32, %arg1: i32) -> (i32, i32, i32) {
    %c0_i32 = arith.constant 0 : i32
    %c0_i32_0 = arith.constant 0 : i32
    %c0_i32_1 = arith.constant 0 : i32
    return %arg0, %c0_i32, %c0_i32_0 : i32, i32, i32
  }
  func.func @transform_2(%arg0: i32, %arg1: i32) -> (i32, i32, i32) {
    %c0_i32 = arith.constant 0 : i32
    %c0_i32_0 = arith.constant 0 : i32
    return %arg0, %c0_i32, %arg1 : i32, i32, i32
  }
  func.func @transform_3(%arg0: i32, %arg1: i32) -> (i32, i32, i32) {
    %c0_i32 = arith.constant 0 : i32
    %c0_i32_0 = arith.constant 0 : i32
    return %arg0, %c0_i32, %arg1 : i32, i32, i32
  }
}

</mosaic_0001>

<llo_original>
// kernel: tpu_custom_call.1
$region0: #{tpu_custom_call.1}
  #allocation0 [shape = 'u32[]', space=smem, size = 0x4, offset = 0x4, fixed_abs, tag = 'smem constant byte address 0x4 - core index']
  #allocation1 [shape = 'u32[144,128]{1,0:T(1,128)}', space=vmem, size = 0x12000, scoped, tag = 'internal scratch']
  %s0 = inlined_call_operand.vmem [shape: f32[2,8,1], index: 0, kind: input, shape index: {}]
  %s1 = inlined_call_operand.vmem [shape: f32[2,8,1], index: 1, kind: input, shape index: {}]
  %s2 = inlined_call_operand.hbm [shape: f32[2,8,1024], index: 2, kind: input, shape index: {}]
  %s3 = inlined_call_operand.hbm [shape: f32[2,8,1024], index: 3, kind: output, shape index: {}]
  %s4 = sld [smem:[#allocation0]]
  $region26: #{tpu_custom_call.1} parent=0
    _
  %s6 = ssub.s32 1, %s4
  %s7 = scalar_select 0, %s6, %s4
  $region1: #{tpu_custom_call.1} parent=0
    #allocation2 [shape = 'u8[65536]{0}', space=vmem, size = 0x10000, scoped, tag = 'input window, operand 2, single buffered']
    #allocation3 [shape = 's32[1]{0}', space=sflag, size = 0x4, scoped, tag = 'scoped memory for tpu_custom_call.1']
    #allocation4 [shape = 's32[1]{0}', space=sflag, size = 0x4, scoped, tag = 'scoped memory for tpu_custom_call.1']
    #allocation5 [shape = 'u8[65536]{0}', space=vmem, size = 0x10000, scoped, tag = 'output window, operand 0, single buffered']
    %8 = vsyncpa [#allocation3], 0
    %9 = vsyncpa [#allocation4], 0
    // Predicated region
    $region2: #{tpu_custom_call.1} parent=1 // pred_check
      _
    $region3: #{tpu_custom_call.1} parent=1 // pred_check_branch
      %11 = sbr.rel (0) target = $region5
    $region4: #{tpu_custom_call.1} parent=1 // pred_region
      _
    $region5: #{tpu_custom_call.1} parent=1 // pred_fallthru
      _
    // Predicated region
    $region6: #{tpu_custom_call.1} parent=1 // pred_check
      _
    $region7: #{tpu_custom_call.1} parent=1 // pred_check_branch
      %13 = sbr.rel (0) target = $region9
    $region8: #{tpu_custom_call.1} parent=1 // pred_region
      _
    $region9: #{tpu_custom_call.1} parent=1 // pred_fallthru
      _
    // Predicated region
    $region10: #{tpu_custom_call.1} parent=1 // pred_check
      _
    $region11: #{tpu_custom_call.1} parent=1 // pred_check_branch
      %15 = sbr.rel (0) target = $region13
    $region12: #{tpu_custom_call.1} parent=1 // pred_region
      %s17 = ssub.s32 2048, 2048
      %18 = vsyncadd [#allocation3], %s17
      %s19 = sshll.u32 [#allocation2], 4
      %s20 = int_to_ptr.vmem [resolvable:$true] %s19
      %25 = dma.hbm_to_vmem [thread:$0]  %s2, 2048, %s20, [#allocation3], 1024, 1024, 64
    $region13: #{tpu_custom_call.1} parent=1 // pred_fallthru
      _
    // Predicated region
    $region14: #{tpu_custom_call.1} parent=1 // pred_check
      _
    $region15: #{tpu_custom_call.1} parent=1 // pred_check_branch
      %27 = sbr.rel (0) target = $region17
    $region16: #{tpu_custom_call.1} parent=1 // pred_region
      %28 = dma.done [#allocation3], 2048
    $region17: #{tpu_custom_call.1} parent=1 // pred_fallthru
      _
    %v29 = vld [vmem:[#allocation2] sm:$0xff]
    %v30 = vld [vmem:[#allocation2 + $0x8] sm:$0xff]
    %v31 = vld [vmem:[#allocation2 + $0x10] sm:$0xff]
    %v32 = vld [vmem:[#allocation2 + $0x18] sm:$0xff]
    %v33 = vld [vmem:[#allocation2 + $0x20] sm:$0xff]
    %v34 = vld [vmem:[#allocation2 + $0x28] sm:$0xff]
    %v35 = vld [vmem:[#allocation2 + $0x30] sm:$0xff]
    %v36 = vld [vmem:[#allocation2 + $0x38] sm:$0xff]
    %v37 = vld [vmem:[#allocation2 + $0x40] sm:$0xff]
    %v38 = vld [vmem:[#allocation2 + $0x48] sm:$0xff]
    %v39 = vld [vmem:[#allocation2 + $0x50] sm:$0xff]
    %v40 = vld [vmem:[#allocation2 + $0x58] sm:$0xff]
    %v41 = vld [vmem:[#allocation2 + $0x60] sm:$0xff]
    %v42 = vld [vmem:[#allocation2 + $0x68] sm:$0xff]
    %v43 = vld [vmem:[#allocation2 + $0x70] sm:$0xff]
    %v44 = vld [vmem:[#allocation2 + $0x78] sm:$0xff]
    %v45 = vrot.slane %v29, 4
    %v46 = vadd.f32 %v29, %v45
    %v47 = vrot.slane %v46, 2
    %v48 = vadd.f32 %v46, %v47
    %v49 = vrot.slane %v48, 1
    %v50 = vadd.f32 %v48, %v49
    %v51 = vrot.slane %v30, 4
    %v52 = vadd.f32 %v30, %v51
    %v53 = vrot.slane %v52, 2
    %v54 = vadd.f32 %v52, %v53
    %v55 = vrot.slane %v54, 1
    %v56 = vadd.f32 %v54, %v55
    %v57 = vrot.slane %v31, 4
    %v58 = vadd.f32 %v31, %v57
    %v59 = vrot.slane %v58, 2
    %v60 = vadd.f32 %v58, %v59
    %v61 = vrot.slane %v60, 1
    %v62 = vadd.f32 %v60, %v61
    %v63 = vrot.slane %v32, 4
    %v64 = vadd.f32 %v32, %v63
    %v65 = vrot.slane %v64, 2
    %v66 = vadd.f32 %v64, %v65
    %v67 = vrot.slane %v66, 1
    %v68 = vadd.f32 %v66, %v67
    %v69 = vrot.slane %v33, 4
    %v70 = vadd.f32 %v33, %v69
    %v71 = vrot.slane %v70, 2
    %v72 = vadd.f32 %v70, %v71
    %v73 = vrot.slane %v72, 1
    %v74 = vadd.f32 %v72, %v73
    %v75 = vrot.slane %v34, 4
    %v76 = vadd.f32 %v34, %v75
    %v77 = vrot.slane %v76, 2
    %v78 = vadd.f32 %v76, %v77
    %v79 = vrot.slane %v78, 1
    %v80 = vadd.f32 %v78, %v79
    %v81 = vrot.slane %v35, 4
    %v82 = vadd.f32 %v35, %v81
    %v83 = vrot.slane %v82, 2
    %v84 = vadd.f32 %v82, %v83
    %v85 = vrot.slane %v84, 1
    %v86 = vadd.f32 %v84, %v85
    %v87 = vrot.slane %v36, 4
    %v88 = vadd.f32 %v36, %v87
    %v89 = vrot.slane %v88, 2
    %v90 = vadd.f32 %v88, %v89
    %v91 = vrot.slane %v90, 1
    %v92 = vadd.f32 %v90, %v91
    %v93 = vrot.slane %v37, 4
    %v94 = vadd.f32 %v37, %v93
    %v95 = vrot.slane %v94, 2
    %v96 = vadd.f32 %v94, %v95
    %v97 = vrot.slane %v96, 1
    %v98 = vadd.f32 %v96, %v97
    %v99 = vrot.slane %v38, 4
    %v100 = vadd.f32 %v38, %v99
    %v101 = vrot.slane %v100, 2
    %v102 = vadd.f32 %v100, %v101
    %v103 = vrot.slane %v102, 1
    %v104 = vadd.f32 %v102, %v103
    %v105 = vrot.slane %v39, 4
    %v106 = vadd.f32 %v39, %v105
    %v107 = vrot.slane %v106, 2
    %v108 = vadd.f32 %v106, %v107
    %v109 = vrot.slane %v108, 1
    %v110 = vadd.f32 %v108, %v109
    %v111 = vrot.slane %v40, 4
    %v112 = vadd.f32 %v40, %v111
    %v113 = vrot.slane %v112, 2
    %v114 = vadd.f32 %v112, %v113
    %v115 = vrot.slane %v114, 1
    %v116 = vadd.f32 %v114, %v115
    %v117 = vrot.slane %v41, 4
    %v118 = vadd.f32 %v41, %v117
    %v119 = vrot.slane %v118, 2
    %v120 = vadd.f32 %v118, %v119
    %v121 = vrot.slane %v120, 1
    %v122 = vadd.f32 %v120, %v121
    %v123 = vrot.slane %v42, 4
    %v124 = vadd.f32 %v42, %v123
    %v125 = vrot.slane %v124, 2
    %v126 = vadd.f32 %v124, %v125
    %v127 = vrot.slane %v126, 1
    %v128 = vadd.f32 %v126, %v127
    %v129 = vrot.slane %v43, 4
    %v130 = vadd.f32 %v43, %v129
    %v131 = vrot.slane %v130, 2
    %v132 = vadd.f32 %v130, %v131
    %v133 = vrot.slane %v132, 1
    %v134 = vadd.f32 %v132, %v133
    %v135 = vrot.slane %v44, 4
    %v136 = vadd.f32 %v44, %v135
    %v137 = vrot.slane %v136, 2
    %v138 = vadd.f32 %v136, %v137
    %v139 = vrot.slane %v138, 1
    %v140 = vadd.f32 %v138, %v139
    %v141 = vmul.f32 %v50, 0.125
    %v142 = vmul.f32 %v56, 0.125
    %v143 = vmul.f32 %v62, 0.125
    %v144 = vmul.f32 %v68, 0.125
    %v145 = vmul.f32 %v74, 0.125
    %v146 = vmul.f32 %v80, 0.125
    %v147 = vmul.f32 %v86, 0.125
    %v148 = vmul.f32 %v92, 0.125
    %v149 = vmul.f32 %v98, 0.125
    %v150 = vmul.f32 %v104, 0.125
    %v151 = vmul.f32 %v110, 0.125
    %v152 = vmul.f32 %v116, 0.125
    %v153 = vmul.f32 %v122, 0.125
    %v154 = vmul.f32 %v128, 0.125
    %v155 = vmul.f32 %v134, 0.125
    %v156 = vmul.f32 %v140, 0.125
    %v157 = vld [vmem:[%s0] sm:$0xff]
    %v158 = vld [vmem:[%s0 + $0x8] sm:$0xff]
    %160 = vset.pattern.permute.xlu0 0
    %161 = vperm.xlu0 %160, %v157
    %v162 = vpop.permute.xlu0 %161
    %165 = vset.pattern.permute.xlu0 0
    %166 = vperm.xlu0 %165, %v158
    %v167 = vpop.permute.xlu0 %166
    %v169 = vmul.f32 %v162, %v29
    %v170 = vmul.f32 %v162, %v30
    %v171 = vmul.f32 %v162, %v31
    %v172 = vmul.f32 %v162, %v32
    %v173 = vmul.f32 %v162, %v33
    %v174 = vmul.f32 %v162, %v34
    %v175 = vmul.f32 %v162, %v35
    %v176 = vmul.f32 %v162, %v36
    %v177 = vmul.f32 %v167, %v37
    %v178 = vmul.f32 %v167, %v38
    %v179 = vmul.f32 %v167, %v39
    %v180 = vmul.f32 %v167, %v40
    %v181 = vmul.f32 %v167, %v41
    %v182 = vmul.f32 %v167, %v42
    %v183 = vmul.f32 %v167, %v43
    %v184 = vmul.f32 %v167, %v44
    %v185 = vrot.slane %v169, 4
    %v186 = vadd.f32 %v169, %v185
    %v187 = vrot.slane %v186, 2
    %v188 = vadd.f32 %v186, %v187
    %v189 = vrot.slane %v188, 1
    %v190 = vadd.f32 %v188, %v189
    %v191 = vrot.slane %v170, 4
    %v192 = vadd.f32 %v170, %v191
    %v193 = vrot.slane %v192, 2
    %v194 = vadd.f32 %v192, %v193
    %v195 = vrot.slane %v194, 1
    %v196 = vadd.f32 %v194, %v195
    %v197 = vrot.slane %v171, 4
    %v198 = vadd.f32 %v171, %v197
    %v199 = vrot.slane %v198, 2
    %v200 = vadd.f32 %v198, %v199
    %v201 = vrot.slane %v200, 1
    %v202 = vadd.f32 %v200, %v201
    %v203 = vrot.slane %v172, 4
    %v204 = vadd.f32 %v172, %v203
    %v205 = vrot.slane %v204, 2
    %v206 = vadd.f32 %v204, %v205
    %v207 = vrot.slane %v206, 1
    %v208 = vadd.f32 %v206, %v207
    %v209 = vrot.slane %v173, 4
    %v210 = vadd.f32 %v173, %v209
    %v211 = vrot.slane %v210, 2
    %v212 = vadd.f32 %v210, %v211
    %v213 = vrot.slane %v212, 1
    %v214 = vadd.f32 %v212, %v213
    %v215 = vrot.slane %v174, 4
    %v216 = vadd.f32 %v174, %v215
    %v217 = vrot.slane %v216, 2
    %v218 = vadd.f32 %v216, %v217
    %v219 = vrot.slane %v218, 1
    %v220 = vadd.f32 %v218, %v219
    %v221 = vrot.slane %v175, 4
    %v222 = vadd.f32 %v175, %v221
    %v223 = vrot.slane %v222, 2
    %v224 = vadd.f32 %v222, %v223
    %v225 = vrot.slane %v224, 1
    %v226 = vadd.f32 %v224, %v225
    %v227 = vrot.slane %v176, 4
    %v228 = vadd.f32 %v176, %v227
    %v229 = vrot.slane %v228, 2
    %v230 = vadd.f32 %v228, %v229
    %v231 = vrot.slane %v230, 1
    %v232 = vadd.f32 %v230, %v231
    %v233 = vrot.slane %v177, 4
    %v234 = vadd.f32 %v177, %v233
    %v235 = vrot.slane %v234, 2
    %v236 = vadd.f32 %v234, %v235
    %v237 = vrot.slane %v236, 1
    %v238 = vadd.f32 %v236, %v237
    %v239 = vrot.slane %v178, 4
    %v240 = vadd.f32 %v178, %v239
    %v241 = vrot.slane %v240, 2
    %v242 = vadd.f32 %v240, %v241
    %v243 = vrot.slane %v242, 1
    %v244 = vadd.f32 %v242, %v243
    %v245 = vrot.slane %v179, 4
    %v246 = vadd.f32 %v179, %v245
    %v247 = vrot.slane %v246, 2
    %v248 = vadd.f32 %v246, %v247
    %v249 = vrot.slane %v248, 1
    %v250 = vadd.f32 %v248, %v249
    %v251 = vrot.slane %v180, 4
    %v252 = vadd.f32 %v180, %v251
    %v253 = vrot.slane %v252, 2
    %v254 = vadd.f32 %v252, %v253
    %v255 = vrot.slane %v254, 1
    %v256 = vadd.f32 %v254, %v255
    %v257 = vrot.slane %v181, 4
    %v258 = vadd.f32 %v181, %v257
    %v259 = vrot.slane %v258, 2
    %v260 = vadd.f32 %v258, %v259
    %v261 = vrot.slane %v260, 1
    %v262 = vadd.f32 %v260, %v261
    %v263 = vrot.slane %v182, 4
    %v264 = vadd.f32 %v182, %v263
    %v265 = vrot.slane %v264, 2
    %v266 = vadd.f32 %v264, %v265
    %v267 = vrot.slane %v266, 1
    %v268 = vadd.f32 %v266, %v267
    %v269 = vrot.slane %v183, 4
    %v270 = vadd.f32 %v183, %v269
    %v271 = vrot.slane %v270, 2
    %v272 = vadd.f32 %v270, %v271
    %v273 = vrot.slane %v272, 1
    %v274 = vadd.f32 %v272, %v273
    %v275 = vrot.slane %v184, 4
    %v276 = vadd.f32 %v184, %v275
    %v277 = vrot.slane %v276, 2
    %v278 = vadd.f32 %v276, %v277
    %v279 = vrot.slane %v278, 1
    %v280 = vadd.f32 %v278, %v279
    %v281 = vld [vmem:[%s1] sm:$0xff]
    %v282 = vld [vmem:[%s1 + $0x8] sm:$0xff]
    %284 = vset.pattern.permute.xlu0 0
    %285 = vperm.xlu0 %284, %v281
    %v286 = vpop.permute.xlu0 %285
    %289 = vset.pattern.permute.xlu0 0
    %290 = vperm.xlu0 %289, %v282
    %v291 = vpop.permute.xlu0 %290
    %v293 = vmul.f32 %v286, %v190
    %v294 = vmul.f32 %v286, %v196
    %v295 = vmul.f32 %v286, %v202
    %v296 = vmul.f32 %v286, %v208
    %v297 = vmul.f32 %v286, %v214
    %v298 = vmul.f32 %v286, %v220
    %v299 = vmul.f32 %v286, %v226
    %v300 = vmul.f32 %v286, %v232
    %v301 = vmul.f32 %v291, %v238
    %v302 = vmul.f32 %v291, %v244
    %v303 = vmul.f32 %v291, %v250
    %v304 = vmul.f32 %v291, %v256
    %v305 = vmul.f32 %v291, %v262
    %v306 = vmul.f32 %v291, %v268
    %v307 = vmul.f32 %v291, %v274
    %v308 = vmul.f32 %v291, %v280
    %v309 = vadd.f32 %v141, %v293
    %v310 = vadd.f32 %v142, %v294
    %v311 = vadd.f32 %v143, %v295
    %v312 = vadd.f32 %v144, %v296
    %v313 = vadd.f32 %v145, %v297
    %v314 = vadd.f32 %v146, %v298
    %v315 = vadd.f32 %v147, %v299
    %v316 = vadd.f32 %v148, %v300
    %v317 = vadd.f32 %v149, %v301
    %v318 = vadd.f32 %v150, %v302
    %v319 = vadd.f32 %v151, %v303
    %v320 = vadd.f32 %v152, %v304
    %v321 = vadd.f32 %v153, %v305
    %v322 = vadd.f32 %v154, %v306
    %v323 = vadd.f32 %v155, %v307
    %v324 = vadd.f32 %v156, %v308
    %325 = vst [vmem:[#allocation5] sm:$0xff] %v309
    %326 = vst [vmem:[#allocation5 + $0x8] sm:$0xff] %v310
    %327 = vst [vmem:[#allocation5 + $0x10] sm:$0xff] %v311
    %328 = vst [vmem:[#allocation5 + $0x18] sm:$0xff] %v312
    %329 = vst [vmem:[#allocation5 + $0x20] sm:$0xff] %v313
    %330 = vst [vmem:[#allocation5 + $0x28] sm:$0xff] %v314
    %331 = vst [vmem:[#allocation5 + $0x30] sm:$0xff] %v315
    %332 = vst [vmem:[#allocation5 + $0x38] sm:$0xff] %v316
    %333 = vst [vmem:[#allocation5 + $0x40] sm:$0xff] %v317
    %334 = vst [vmem:[#allocation5 + $0x48] sm:$0xff] %v318
    %335 = vst [vmem:[#allocation5 + $0x50] sm:$0xff] %v319
    %336 = vst [vmem:[#allocation5 + $0x58] sm:$0xff] %v320
    %337 = vst [vmem:[#allocation5 + $0x60] sm:$0xff] %v321
    %338 = vst [vmem:[#allocation5 + $0x68] sm:$0xff] %v322
    %339 = vst [vmem:[#allocation5 + $0x70] sm:$0xff] %v323
    %340 = vst [vmem:[#allocation5 + $0x78] sm:$0xff] %v324
    // Predicated region
    $region18: #{tpu_custom_call.1} parent=1 // pred_check
      _
    $region19: #{tpu_custom_call.1} parent=1 // pred_check_branch
      %342 = sbr.rel (0) target = $region21
    $region20: #{tpu_custom_call.1} parent=1 // pred_region
      %s344 = ssub.s32 2048, 2048
      %345 = vsyncadd [#allocation4], %s344
      %s346 = sshll.u32 [#allocation5], 4
      %s347 = int_to_ptr.vmem [resolvable:$true] %s346
      %352 = dma.vmem_to_hbm [thread:$0]  %s347, 2048, %s3, [#allocation4], 1024, 1024, 64
    $region21: #{tpu_custom_call.1} parent=1 // pred_fallthru
      _
    // Predicated region
    $region22: #{tpu_custom_call.1} parent=1 // pred_check
      _
    $region23: #{tpu_custom_call.1} parent=1 // pred_check_branch
      %354 = sbr.rel (0) target = $region25
    $region24: #{tpu_custom_call.1} parent=1 // pred_region
      %355 = dma.done [#allocation4], 2048
    $region25: #{tpu_custom_call.1} parent=1 // pred_fallthru
      _
    %356 = vsyncpa [#allocation3], 1
    %357 = vsyncpa [#allocation4], 1

</llo_original>
